<compile_context>
chip_gen: v7x
topology: tpu7x:2x2x1
jax: 0.10.0
libtpu: 0.0.40
codegen_flags: <defaults>
</compile_context>

<pallas_src>
import functools

import numpy as np
import jax
import jax.numpy as jnp
from jax.experimental import pallas as pl
from jax.experimental.pallas import tpu as pltpu


# --------------------------------------------------------------------------- #
# pltpu.roll direction probe (robust against a semantic flip across versions) #
# --------------------------------------------------------------------------- #
_ROLL_SIGN = None


def _roll_sign():
    """Returns s such that pltpu.roll(x, (s*k) % n, axis=-1)[..., t] == x[..., t+k]."""
    global _ROLL_SIGN
    if _ROLL_SIGN is None:
        def probe(x_ref, o_ref):
            o_ref[...] = pltpu.roll(x_ref[...], shift=1, axis=1)

        x = jax.lax.broadcasted_iota(jnp.float32, (8, 128), 1)
        y = pl.pallas_call(
            probe, out_shape=jax.ShapeDtypeStruct((8, 128), jnp.float32))(x)
        # jnp.roll semantics: out[i] = in[i - shift]
        _ROLL_SIGN = -1 if bool(jnp.array_equal(y, jnp.roll(x, 1, axis=1))) else 1
    return _ROLL_SIGN


# ----------------------------- fused kernel ----------------------------------
def _st_block8_kernel(x_ref, g_ref, a1_ref, a1b_ref, w1_ref, bb1_ref,
                      thetaT_ref, caw1_ref, caw2_ref, a2_ref, a2b_ref,
                      w2_ref, bb2_ref, scal_ref, o_ref, *, T, roll_sign):
    f32 = jnp.float32
    bf16 = jnp.bfloat16
    NT = x_ref.shape[-1]

    # time index of every lane inside its node's window (time is the fast axis)
    cols = jax.lax.broadcasted_iota(jnp.int32, (1, NT), 1) % T
    keep = {}
    for s in range(-3, 4):
        if s > 0:
            keep[s] = cols < (T - s)
        elif s < 0:
            keep[s] = cols >= (-s)

    def shifted_stack(x_al_b):
        """(c, NT) bf16 -> (7c, NT) bf16; block s: y_s[:, n*T+t] = x[:, n*T+t+s],
        zero where t+s falls outside the node's time window."""
        parts = []
        for s in range(-3, 4):
            if s == 0:
                parts.append(x_al_b)
                continue
            rolled = pltpu.roll(x_al_b, shift=(roll_sign * s) % NT, axis=1)
            parts.append(jnp.where(keep[s], rolled, jnp.zeros_like(rolled)))
        return jnp.concatenate(parts, axis=0)

    def time_block(x_al, w_ref, bb_ref, r_idx0):
        """TimeBlock_inception on an aligned [c, NT] f32 slab -> [c, NT] f32."""
        c = x_al.shape[0]
        xs = shifted_stack(x_al.astype(bf16))                       # (7c, NT)
        # all 3 GLU branches x all taps as ONE MXU matmul (K = 7*c)
        acc = jnp.dot(w_ref[...], xs, preferred_element_type=f32) + bb_ref[...]
        out = None
        for bi in range(3):                                         # k = 3, 5, 7
            p_blk = acc[2 * c * bi:2 * c * bi + c, :]
            q_blk = acc[2 * c * bi + c:2 * c * bi + 2 * c, :]
            gated = (p_blk + x_al) * jax.nn.sigmoid(q_blk)
            contrib = scal_ref[r_idx0 + bi] * gated                 # SMEM scalar
            out = contrib if out is None else out + contrib
        return out

    # temporal1: c_in -> 32 (channel zero-pad / 1x1 conv alignment as one matmul)
    x_al1 = jnp.dot(a1_ref[...], x_ref[...], preferred_element_type=f32) + a1b_ref[...]
    t1 = time_block(x_al1, w1_ref, bb1_ref, 0)
    # graph conv over nodes: einsum('jk,ckt->cjt') == t1 @ kron(supports^T, I_T)
    lfs = jnp.dot(t1.astype(bf16), g_ref[...], preferred_element_type=f32)
    # Theta + residual + ReLU
    t2 = jnp.maximum(jnp.dot(thetaT_ref[...], lfs.astype(bf16),
                             preferred_element_type=f32) + t1, 0.0)
    # channel attention: global avg/max pool over the (N,T) lanes + 2-layer MLP
    avg = jnp.mean(t2, axis=1, keepdims=True)                       # (32, 1)
    mx = jnp.max(t2, axis=1, keepdims=True)                         # (32, 1)

    def fc(v):
        h = jnp.maximum(jnp.dot(caw1_ref[...], v, preferred_element_type=f32), 0.0)
        return jnp.dot(caw2_ref[...], h, preferred_element_type=f32)

    ca = jax.nn.sigmoid(fc(avg) + fc(mx))                           # (32, 1)
    t2 = scal_ref[3] * (ca * t2) + scal_ref[4] * t2
    # temporal2: 32 -> c_out (alignment = 1x1 conv_down)
    x_al2 = jnp.dot(a2_ref[...], t2.astype(bf16), preferred_element_type=f32) + a2b_ref[...]
    o_ref[...] = time_block(x_al2, w2_ref, bb2_ref, 5)


# ----------------------------- host-side helpers -----------------------------
def _align_operator(c_in_blk, out_ch, down_w=None, down_b=None):
    """X_input = A @ X + b reproducing TimeBlock_inception's channel alignment."""
    if c_in_blk == out_ch:
        a = jnp.eye(out_ch, dtype=jnp.float32)
        b = jnp.zeros((out_ch, 1), jnp.float32)
    elif c_in_blk < out_ch:
        a = jnp.concatenate([jnp.eye(c_in_blk, dtype=jnp.float32),
                             jnp.zeros((out_ch - c_in_blk, c_in_blk), jnp.float32)],
                            axis=0)
        b = jnp.zeros((out_ch, 1), jnp.float32)
    else:
        if down_w is None:
            raise ValueError("conv_down weights required when c_in > out_channels")
        a = down_w.astype(jnp.float32)
        b = down_b.astype(jnp.float32)[:, None]
    return a.astype(jnp.bfloat16), b


def _pack_branch_weights(w3, b3, w5, b5, w7, b7):
    """Conv2d OIHW weights (2c, c, 1, k) for k=3,5,7 -> one (6c, 7c) tap matrix.

    Row blocks = branches (k=3,5,7), column blocks = time shifts s=-3..3; the
    block for (branch k, shift s) is w_k[:, :, 0, s + (k-1)//2] (zero if |s|>pad)."""
    c2, c = w3.shape[0], w3.shape[1]
    rows = []
    for w, k in ((w3, 3), (w5, 5), (w7, 7)):
        p = (k - 1) // 2
        blocks = []
        for s in range(-3, 4):
            dt = s + p
            if 0 <= dt < k:
                blocks.append(w[:, :, 0, dt])
            else:
                blocks.append(jnp.zeros((c2, c), w.dtype))
        rows.append(jnp.concatenate(blocks, axis=1))                # (2c, 7c)
    wstack = jnp.concatenate(rows, axis=0).astype(jnp.bfloat16)     # (6c, 7c)
    bstack = jnp.concatenate([b3, b5, b7], axis=0)[:, None].astype(jnp.float32)
    return wstack, bstack


def st_block_8_forward(x, supports, p):
    """x: [B, N, T, c_in], supports: [B, N, N] -> [B, N, T, c_out]."""
    B, N, T, c_in = x.shape
    NT = N * T
    SC = p['theta'].shape[0]                     # spatial_channels = 32
    c_out = p['w2_3'].shape[0] // 2
    bf16 = jnp.bfloat16

    # channel-major, (node,time)-flattened input slabs (lane dim = N*T), bf16
    x_cm = jnp.transpose(x, (0, 3, 1, 2)).reshape(B, c_in, NT).astype(bf16)
    # graph operator as a right-multiplication matrix: kron(supports^T, I_T), bf16
    eye_t = jnp.eye(T, dtype=jnp.float32)
    g = jnp.einsum('bjk,uv->bkujv', supports, eye_t).reshape(B, NT, NT).astype(bf16)

    a1, a1b = _align_operator(c_in, SC)
    a2, a2b = _align_operator(SC, c_out, p.get('down2_w'), p.get('down2_b'))
    w1p, bb1 = _pack_branch_weights(p['w1_3'], p['b1_3'], p['w1_5'], p['b1_5'],
                                    p['w1_7'], p['b1_7'])
    w2p, bb2 = _pack_branch_weights(p['w2_3'], p['b2_3'], p['w2_5'], p['b2_5'],
                                    p['w2_7'], p['b2_7'])
    scal = jnp.stack([p['r1_3'], p['r1_5'], p['r1_7'], p['r_c'], p['r'],
                      p['r2_3'], p['r2_5'], p['r2_7']]).astype(jnp.float32)
    theta_t = p['theta'].T.astype(bf16)
    ca_w1 = p['ca_w1'].astype(jnp.float32)
    ca_w2 = p['ca_w2'].astype(jnp.float32)

    kernel = functools.partial(_st_block8_kernel, T=T, roll_sign=_roll_sign())

    out_flat = pl.pallas_call(
        kernel,
        out_shape=jax.ShapeDtypeStruct((B, c_out, NT), jnp.float32),
        grid=(B,),
        in_specs=[
            pl.BlockSpec((None, c_in, NT), lambda b: (b, 0, 0)),        # x (per batch)
            pl.BlockSpec((None, NT, NT), lambda b: (b, 0, 0)),          # graph operator
            pl.BlockSpec((SC, c_in), lambda b: (0, 0)),                 # align1
            pl.BlockSpec((SC, 1), lambda b: (0, 0)),
            pl.BlockSpec((6 * SC, 7 * SC), lambda b: (0, 0)),           # temporal1 taps
            pl.BlockSpec((6 * SC, 1), lambda b: (0, 0)),
            pl.BlockSpec((SC, SC), lambda b: (0, 0)),                   # Theta^T
            pl.BlockSpec(ca_w1.shape, lambda b: (0, 0)),                # CA fc1
            pl.BlockSpec(ca_w2.shape, lambda b: (0, 0)),                # CA fc2
            pl.BlockSpec((c_out, SC), lambda b: (0, 0)),                # align2
            pl.BlockSpec((c_out, 1), lambda b: (0, 0)),
            pl.BlockSpec((6 * c_out, 7 * c_out), lambda b: (0, 0)),     # temporal2 taps
            pl.BlockSpec((6 * c_out, 1), lambda b: (0, 0)),
            pl.BlockSpec(memory_space=pltpu.MemorySpace.SMEM),          # 8 residual scalars
        ],
        out_specs=pl.BlockSpec((None, c_out, NT), lambda b: (b, 0, 0)),
        # VMEM footprint at these shapes is < 1 MiB per step; default scoped
        # limit is ample on v5e/v6e/v7x, so no explicit vmem_limit_bytes.
        compiler_params=pltpu.CompilerParams(
            dimension_semantics=("parallel",)),
    )(x_cm, g, a1, a1b, w1p, bb1, theta_t, ca_w1, ca_w2, a2, a2b, w2p, bb2, scal)

    t3 = out_flat.reshape(B, c_out, N, T).transpose(0, 2, 3, 1)        # [B, N, T, c_out]

    # TODO(synk): BatchNorm2d(num_nodes) with training-mode batch statistics needs a
    # cross-batch reduction, so it is applied in plain JAX on the fused-kernel output.
    mean = jnp.mean(t3, axis=(0, 2, 3), keepdims=True)
    var = jnp.mean(jnp.square(t3 - mean), axis=(0, 2, 3), keepdims=True)
    t3n = (t3 - mean) * jax.lax.rsqrt(var + 1e-5)
    return t3n * p['bn_gamma'][None, :, None, None] + p['bn_beta'][None, :, None, None]


# ----------------------------- pure-JAX reference (PyTorch semantics) --------
def reference_forward(x, supports, p):
    B, N, T, _ = x.shape
    SC = p['theta'].shape[0]
    c_out = p['w2_3'].shape[0] // 2

    def time_block_ref(X, out_ch, wb, down):
        Xp = jnp.transpose(X, (0, 3, 1, 2))                   # [B, C, N, T]
        c = Xp.shape[1]
        if c == out_ch:
            Xi = Xp
        elif c < out_ch:
            Xi = jnp.concatenate(
                [Xp, jnp.zeros((B, out_ch - c, N, T), Xp.dtype)], axis=1)
        else:
            dw, db = down
            Xi = jnp.einsum('oc,bcnt->bont', dw, Xp) + db[None, :, None, None]

        def glu(w, b, k):
            pad = (k - 1) // 2
            tmp = jax.lax.conv_general_dilated(
                Xi, w, window_strides=(1, 1), padding=((0, 0), (pad, pad)),
                dimension_numbers=('NCHW', 'OIHW', 'NCHW'))
            tmp = tmp + b[None, :, None, None]
            P, Q = tmp[:, :out_ch], tmp[:, out_ch:]
            return (P + Xi) * jax.nn.sigmoid(Q)

        (w3, b3, r3), (w5, b5, r5), (w7, b7, r7) = wb
        out = r3 * glu(w3, b3, 3) + r5 * glu(w5, b5, 5) + r7 * glu(w7, b7, 7)
        return jnp.transpose(out, (0, 2, 3, 1))               # [B, N, T, out_ch]

    t = time_block_ref(
        x, SC,
        [(p['w1_3'], p['b1_3'], p['r1_3']),
         (p['w1_5'], p['b1_5'], p['r1_5']),
         (p['w1_7'], p['b1_7'], p['r1_7'])], None)
    lfs = jnp.einsum('ijk,iklm->ijlm', supports, t)
    t2 = jax.nn.relu(jnp.matmul(lfs, p['theta']) + t)

    z = jnp.transpose(t2, (0, 3, 1, 2))                       # [B, 32, N, T]
    avg = jnp.mean(z, axis=(2, 3))
    mx = jnp.max(z, axis=(2, 3))

    def fc(v):
        return jax.nn.relu(v @ p['ca_w1'].T) @ p['ca_w2'].T

    ca = jax.nn.sigmoid(fc(avg) + fc(mx))                     # [B, 32]
    t2 = p['r_c'] * (ca[:, None, None, :] * t2) + p['r'] * t2

    t3 = time_block_ref(
        t2, c_out,
        [(p['w2_3'], p['b2_3'], p['r2_3']),
         (p['w2_5'], p['b2_5'], p['r2_5']),
         (p['w2_7'], p['b2_7'], p['r2_7'])],
        (p['down2_w'], p['down2_b']))

    mean = jnp.mean(t3, axis=(0, 2, 3), keepdims=True)
    var = jnp.mean(jnp.square(t3 - mean), axis=(0, 2, 3), keepdims=True)
    t3n = (t3 - mean) * jax.lax.rsqrt(var + 1e-5)
    return t3n * p['bn_gamma'][None, :, None, None] + p['bn_beta'][None, :, None, None]


# ----------------------------- demo / self-check -----------------------------
if __name__ == "__main__":
    B, N, T = 2, 16, 16          # batch, num_nodes, tem_size
    c_in, c_out, SC = 4, 16, 32  # input/output features, spatial_channels (module const)

    key = jax.random.PRNGKey(0)
    ks = jax.random.split(key, 32)
    nrm = lambda i, shape, s=1.0: s * jax.random.normal(ks[i], shape, dtype=jnp.float32)

    x = nrm(0, (B, N, T, c_in))
    supports = nrm(1, (B, N, N), 0.3)

    p = dict(
        w1_3=nrm(2, (2 * SC, SC, 1, 3), 0.1), b1_3=nrm(3, (2 * SC,), 0.1),
        w1_5=nrm(4, (2 * SC, SC, 1, 5), 0.1), b1_5=nrm(5, (2 * SC,), 0.1),
        w1_7=nrm(6, (2 * SC, SC, 1, 7), 0.1), b1_7=nrm(7, (2 * SC,), 0.1),
        r1_3=nrm(8, ()), r1_5=nrm(9, ()), r1_7=nrm(10, ()),
        theta=jax.random.uniform(ks[11], (SC, SC), jnp.float32,
                                 -1.0 / SC ** 0.5, 1.0 / SC ** 0.5),
        ca_w1=nrm(12, (SC // 16, SC), 0.3), ca_w2=nrm(13, (SC, SC // 16), 0.3),
        r_c=nrm(14, ()), r=nrm(15, ()),
        down2_w=nrm(16, (c_out, SC), 0.15), down2_b=nrm(17, (c_out,), 0.1),
        w2_3=nrm(18, (2 * c_out, c_out, 1, 3), 0.1), b2_3=nrm(19, (2 * c_out,), 0.1),
        w2_5=nrm(20, (2 * c_out, c_out, 1, 5), 0.1), b2_5=nrm(21, (2 * c_out,), 0.1),
        w2_7=nrm(22, (2 * c_out, c_out, 1, 7), 0.1), b2_7=nrm(23, (2 * c_out,), 0.1),
        r2_3=nrm(24, ()), r2_5=nrm(25, ()), r2_7=nrm(26, ()),
        bn_gamma=1.0 + nrm(27, (N,), 0.1), bn_beta=nrm(28, (N,), 0.1),
    )

    out = st_block_8_forward(x, supports, p)
    out = jax.block_until_ready(out)

    ref = reference_forward(x, supports, p)
    assert out.shape == ref.shape == (B, N, T, c_out), (out.shape, ref.shape)
    np.testing.assert_allclose(np.asarray(out), np.asarray(ref), rtol=5e-2, atol=5e-2)

    print("KERNEL_OK")
</pallas_src>

<mosaic_0001>
module attributes {stable_mosaic.version = 11 : i64} {
  func.func @probe(%arg0: memref<8x128xf32, #tpu.memory_space<vmem>>, %arg1: memref<8x128xf32, #tpu.memory_space<vmem>>) attributes {dimension_semantics = [], scalar_prefetch = 0 : i64, scratch_operands = 0 : i64, tpu.core_type = #tpu.core_type<tc>} {
    %c0 = arith.constant 0 : index
    %c0_0 = arith.constant 0 : index
    %0 = vector.load %arg0[%c0, %c0_0] : memref<8x128xf32, #tpu.memory_space<vmem>>, vector<8x128xf32>
    %c1_i32 = arith.constant 1 : i32
    %1 = tpu.dynamic_rotate %0 by %c1_i32 dim 1 : vector<8x128xf32>, i32 -> vector<8x128xf32>
    %c0_1 = arith.constant 0 : index
    %c0_2 = arith.constant 0 : index
    %2 = vector.load %arg1[%c0_1, %c0_2] : memref<8x128xf32, #tpu.memory_space<vmem>>, vector<8x128xf32>
    tpu.vector_store %arg1[%c0_1, %c0_2], %1 {strides = array<i32>} : memref<8x128xf32, #tpu.memory_space<vmem>>, vector<8x128xf32>,
    return
  }
}

</mosaic_0001>

<llo_original>
// kernel: tpu_custom_call.1
$region0: #{tpu_custom_call.1}
  #allocation0 [shape = 'u32[]', space=smem, size = 0x4, offset = 0x4, fixed_abs, tag = 'smem constant byte address 0x4 - core index']
  #allocation1 [shape = 'u32[144,128]{1,0:T(1,128)}', space=vmem, size = 0x12000, scoped, tag = 'internal scratch']
  %s0 = inlined_call_operand.hbm [shape: f32[8,128], index: 0, kind: input, shape index: {}]
  %s1 = inlined_call_operand.hbm [shape: f32[8,128], index: 1, kind: output, shape index: {}]
  %s2 = sld [smem:[#allocation0]]
  $region18: #{tpu_custom_call.1} parent=0
    _
  %s4 = ssub.s32 1, %s2
  %s5 = scalar_select 0, %s4, %s2
  $region1: #{tpu_custom_call.1} parent=0
    #allocation2 [shape = 'u8[4096]{0}', space=vmem, size = 0x1000, scoped, tag = 'input window, operand 0, single buffered']
    #allocation3 [shape = 's32[1]{0}', space=sflag, size = 0x4, scoped, tag = 'scoped memory for tpu_custom_call.1']
    #allocation4 [shape = 's32[1]{0}', space=sflag, size = 0x4, scoped, tag = 'scoped memory for tpu_custom_call.1']
    #allocation5 [shape = 'u8[4096]{0}', space=vmem, size = 0x1000, scoped, tag = 'output window, operand 0, single buffered']
    %6 = vsyncpa [#allocation3], 0
    %7 = vsyncpa [#allocation4], 0
    // Predicated region
    $region2: #{tpu_custom_call.1} parent=1 // pred_check
      _
    $region3: #{tpu_custom_call.1} parent=1 // pred_check_branch
      %9 = sbr.rel (0) target = $region5
    $region4: #{tpu_custom_call.1} parent=1 // pred_region
      %s11 = ssub.s32 128, 128
      %12 = vsyncadd [#allocation3], %s11
      %s14 = sshll.u32 [#allocation2], 4
      %s15 = int_to_ptr.vmem [resolvable:$true] %s14
      %17 = dma.hbm_to_vmem [thread:$0]  %s0, 128, %s15, [#allocation3]
    $region5: #{tpu_custom_call.1} parent=1 // pred_fallthru
      _
    // Predicated region
    $region6: #{tpu_custom_call.1} parent=1 // pred_check
      _
    $region7: #{tpu_custom_call.1} parent=1 // pred_check_branch
      %19 = sbr.rel (0) target = $region9
    $region8: #{tpu_custom_call.1} parent=1 // pred_region
      %20 = dma.done [#allocation3], 128
    $region9: #{tpu_custom_call.1} parent=1 // pred_fallthru
      _
    %v21 = vld [vmem:[#allocation2] sm:$0xff]
    %22 = vrot.lane.b32.xlu0 %v21, 1
    %v23 = vpop.permute.xlu0 %22
    %24 = vst [vmem:[#allocation5] sm:$0xff] %v23
    // Predicated region
    $region10: #{tpu_custom_call.1} parent=1 // pred_check
      _
    $region11: #{tpu_custom_call.1} parent=1 // pred_check_branch
      %26 = sbr.rel (0) target = $region13
    $region12: #{tpu_custom_call.1} parent=1 // pred_region
      %s28 = ssub.s32 128, 128
      %29 = vsyncadd [#allocation4], %s28
      %s31 = sshll.u32 [#allocation5], 4
      %s32 = int_to_ptr.vmem [resolvable:$true] %s31
      %34 = dma.vmem_to_hbm [thread:$0]  %s32, 128, %s1, [#allocation4]
    $region13: #{tpu_custom_call.1} parent=1 // pred_fallthru
      _
    // Predicated region
    $region14: #{tpu_custom_call.1} parent=1 // pred_check
      _
    $region15: #{tpu_custom_call.1} parent=1 // pred_check_branch
      %36 = sbr.rel (0) target = $region17
    $region16: #{tpu_custom_call.1} parent=1 // pred_region
      %37 = dma.done [#allocation4], 128
    $region17: #{tpu_custom_call.1} parent=1 // pred_fallthru
      _
    %38 = vsyncpa [#allocation3], 1
    %39 = vsyncpa [#allocation4], 1

</llo_original>
